<compile_context>
chip_gen: v7x
topology: tpu7x:2x2x1
jax: 0.10.0
libtpu: 0.0.40
codegen_flags: <defaults>
</compile_context>

<pallas_src>
import jax
import jax.numpy as jnp
from jax import lax
from jax.experimental import pallas as pl
from jax.experimental.pallas import tpu as pltpu


def _round_up(x: int, m: int) -> int:
    return ((x + m - 1) // m) * m


def _sub_linear_kernel(x1_ref, x2_ref, w_ref, o_ref, acc_ref):
    k = pl.program_id(2)

    @pl.when(k == 0)
    def _():
        acc_ref[...] = jnp.zeros_like(acc_ref)

    # VPU subtract (co-issues with MXU), then a single MXU matmul contracting
    # the K dim of d (last dim) with the K dim of the native-layout weight
    # (also last dim):  (tm, tk) x (tn, tk) -> (tm, tn).
    d = x1_ref[...] - x2_ref[...]
    acc_ref[...] += lax.dot_general(
        d, w_ref[...],
        dimension_numbers=(((1,), (1,)), ((), ())),
        preferred_element_type=jnp.float32,
    )

    @pl.when(k == pl.num_programs(2) - 1)
    def _():
        o_ref[...] = acc_ref[...].astype(o_ref.dtype)


def sub_linear(x1, x2, weight, *, tm=256, tn=256, tk=512):
    """x1, x2: (B, S, IN);  weight: (OUT, IN) (PyTorch nn.Linear layout).

    Returns (B, S, OUT) = x1 @ W.T - x2 @ W.T, computed as (x1 - x2) @ W.T in
    a single tiled Pallas kernel.
    """
    B, S, K = x1.shape
    N = weight.shape[0]
    M = B * S

    x1_2d = x1.reshape(M, K)
    x2_2d = x2.reshape(M, K)

    # Clamp tiles to the (alignment-padded) problem size, keeping (8, 128)
    # alignment so every vector store is unmasked / lane-dense.
    tm = min(tm, _round_up(M, 8))
    tn = min(tn, _round_up(N, 128))
    tk = min(tk, _round_up(K, 128))
    Mp = _round_up(M, tm)
    Np = _round_up(N, tn)
    Kp = _round_up(K, tk)

    if (Mp, Kp) != (M, K):
        x1_2d = jnp.pad(x1_2d, ((0, Mp - M), (0, Kp - K)))
        x2_2d = jnp.pad(x2_2d, ((0, Mp - M), (0, Kp - K)))
    w_p = weight
    if (Np, Kp) != (N, K):
        w_p = jnp.pad(weight, ((0, Np - N), (0, Kp - K)))

    grid = (Mp // tm, Np // tn, Kp // tk)

    out_2d = pl.pallas_call(
        _sub_linear_kernel,
        out_shape=jax.ShapeDtypeStruct((Mp, Np), x1.dtype),
        grid=grid,
        in_specs=[
            pl.BlockSpec((tm, tk), lambda i, j, k: (i, k)),   # x1 tile
            pl.BlockSpec((tm, tk), lambda i, j, k: (i, k)),   # x2 tile
            pl.BlockSpec((tn, tk), lambda i, j, k: (j, k)),   # W tile (native OUT,IN)
        ],
        out_specs=pl.BlockSpec((tm, tn), lambda i, j, k: (i, j)),
        scratch_shapes=[pltpu.VMEM((tm, tn), jnp.float32)],
        compiler_params=pltpu.CompilerParams(
            dimension_semantics=("parallel", "parallel", "arbitrary"),
            # Sized for v7x (64 MiB physical VMEM); plenty of headroom on
            # v5e/v6e. Tile footprint (double-buffered) is ~4 MiB at defaults.
            vmem_limit_bytes=32 * 1024 * 1024,
        ),
    )(x1_2d, x2_2d, w_p)

    return out_2d[:M, :N].reshape(B, S, N)


if __name__ == "__main__":
    # Small shapes consistent with the module: batch=2, seq=8, in=32, out=32.
    B, S, IN, OUT = 2, 8, 32, 32

    key = jax.random.PRNGKey(0)
    k1, k2, kw = jax.random.split(key, 3)

    x1 = jax.random.normal(k1, (B, S, IN), dtype=jnp.float32)
    x2 = jax.random.normal(k2, (B, S, IN), dtype=jnp.float32)
    # Deterministic init mimicking nn.Linear default: U(-1/sqrt(IN), 1/sqrt(IN))
    bound = 1.0 / (IN ** 0.5)
    weight = jax.random.uniform(kw, (OUT, IN), minval=-bound, maxval=bound,
                                dtype=jnp.float32)

    out = sub_linear(x1, x2, weight)
    jax.block_until_ready(out)

    # Reference check in plain JAX (matches the PyTorch graph order).
    ref = (jnp.einsum("bsi,oi->bso", x1, weight)
           - jnp.einsum("bsi,oi->bso", x2, weight))
    assert out.shape == (B, S, OUT)
    assert jnp.allclose(out, ref, atol=1e-5, rtol=1e-5)

    print("KERNEL_OK")
</pallas_src>

<mosaic_0001>
module attributes {stable_mosaic.version = 11 : i64} {
  func.func @_sub_linear_kernel(%arg0: i32, %arg1: i32, %arg2: i32, %arg3: memref<16x128xf32, #tpu.memory_space<vmem>>, %arg4: memref<16x128xf32, #tpu.memory_space<vmem>>, %arg5: memref<128x128xf32, #tpu.memory_space<vmem>>, %arg6: memref<16x128xf32, #tpu.memory_space<vmem>>, %arg7: memref<16x128xf32, #tpu.memory_space<vmem>>) attributes {dimension_semantics = [#tpu.dimension_semantics<parallel>, #tpu.dimension_semantics<parallel>, #tpu.dimension_semantics<arbitrary>], iteration_bounds = array<i64: 1, 1, 1>, scalar_prefetch = 0 : i64, scratch_operands = 1 : i64, tpu.core_type = #tpu.core_type<tc>, window_params = [{transform_indices = @transform_0, window_bounds = array<i64: 16, 128>}, {transform_indices = @transform_1, window_bounds = array<i64: 16, 128>}, {transform_indices = @transform_2, window_bounds = array<i64: 128, 128>}, {transform_indices = @transform_3, window_bounds = array<i64: 16, 128>}]} {
    %c0_i32 = arith.constant 0 : i32
    %0 = arith.cmpi eq, %arg2, %c0_i32 : i32
    %1 = arith.extui %0 : i1 to i32
    %c0_i32_0 = arith.constant 0 : i32
    %2 = arith.cmpi ne, %1, %c0_i32_0 : i32
    scf.if %2 {
      %cst_12 = arith.constant 0.000000e+00 : f32
      %14 = vector.broadcast %cst_12 : f32 to vector<16x128xf32>
      %c0_13 = arith.constant 0 : index
      %c0_14 = arith.constant 0 : index
      %15 = vector.load %arg7[%c0_13, %c0_14] : memref<16x128xf32, #tpu.memory_space<vmem>>, vector<16x128xf32>
      tpu.vector_store %arg7[%c0_13, %c0_14], %14 {strides = array<i32>} : memref<16x128xf32, #tpu.memory_space<vmem>>, vector<16x128xf32>,
    } else {
    }
    %c0 = arith.constant 0 : index
    %c0_1 = arith.constant 0 : index
    %3 = vector.load %arg3[%c0, %c0_1] : memref<16x128xf32, #tpu.memory_space<vmem>>, vector<16x128xf32>
    %c0_2 = arith.constant 0 : index
    %c0_3 = arith.constant 0 : index
    %4 = vector.load %arg4[%c0_2, %c0_3] : memref<16x128xf32, #tpu.memory_space<vmem>>, vector<16x128xf32>
    %5 = arith.subf %3, %4 : vector<16x128xf32>
    %c0_4 = arith.constant 0 : index
    %c0_5 = arith.constant 0 : index
    %6 = vector.load %arg7[%c0_4, %c0_5] : memref<16x128xf32, #tpu.memory_space<vmem>>, vector<16x128xf32>
    %c0_6 = arith.constant 0 : index
    %c0_7 = arith.constant 0 : index
    %7 = vector.load %arg5[%c0_6, %c0_7] : memref<128x128xf32, #tpu.memory_space<vmem>>, vector<128x128xf32>
    %cst = arith.constant dense<0.000000e+00> : vector<16x128xf32>
    %8 = tpu.matmul %5, %7, %cst {dimension_numbers = #tpu.dot_dimension_numbers<[1], [1], [0], [0], [0, 0, 1, 0], [], []>} : vector<16x128xf32>, vector<128x128xf32>, vector<16x128xf32> -> vector<16x128xf32>
    %9 = arith.addf %6, %8 : vector<16x128xf32>
    %c0_8 = arith.constant 0 : index
    %c0_9 = arith.constant 0 : index
    %10 = vector.load %arg7[%c0_8, %c0_9] : memref<16x128xf32, #tpu.memory_space<vmem>>, vector<16x128xf32>
    tpu.vector_store %arg7[%c0_8, %c0_9], %9 {strides = array<i32>} : memref<16x128xf32, #tpu.memory_space<vmem>>, vector<16x128xf32>,
    %c0_i32_10 = arith.constant 0 : i32
    %11 = arith.cmpi eq, %arg2, %c0_i32_10 : i32
    %12 = arith.extui %11 : i1 to i32
    %c0_i32_11 = arith.constant 0 : i32
    %13 = arith.cmpi ne, %12, %c0_i32_11 : i32
    scf.if %13 {
      %c0_12 = arith.constant 0 : index
      %c0_13 = arith.constant 0 : index
      %14 = vector.load %arg7[%c0_12, %c0_13] : memref<16x128xf32, #tpu.memory_space<vmem>>, vector<16x128xf32>
      %c0_14 = arith.constant 0 : index
      %c0_15 = arith.constant 0 : index
      %15 = vector.load %arg6[%c0_14, %c0_15] : memref<16x128xf32, #tpu.memory_space<vmem>>, vector<16x128xf32>
      tpu.vector_store %arg6[%c0_14, %c0_15], %14 {strides = array<i32>} : memref<16x128xf32, #tpu.memory_space<vmem>>, vector<16x128xf32>,
    } else {
    }
    return
  }
  func.func @transform_0(%arg0: i32, %arg1: i32, %arg2: i32) -> (i32, i32) {
    %c0_i32 = arith.constant 0 : i32
    return %arg0, %arg2 : i32, i32
  }
  func.func @transform_1(%arg0: i32, %arg1: i32, %arg2: i32) -> (i32, i32) {
    %c0_i32 = arith.constant 0 : i32
    return %arg0, %arg2 : i32, i32
  }
  func.func @transform_2(%arg0: i32, %arg1: i32, %arg2: i32) -> (i32, i32) {
    %c0_i32 = arith.constant 0 : i32
    return %arg1, %arg2 : i32, i32
  }
  func.func @transform_3(%arg0: i32, %arg1: i32, %arg2: i32) -> (i32, i32) {
    %c0_i32 = arith.constant 0 : i32
    return %arg0, %arg1 : i32, i32
  }
}

</mosaic_0001>

<llo_original>
// kernel: tpu_custom_call.1
$region0: #{tpu_custom_call.1}
  #allocation0 [shape = 'u32[]', space=smem, size = 0x4, offset = 0x4, fixed_abs, tag = 'smem constant byte address 0x4 - core index']
  #allocation1 [shape = 'u32[144,128]{1,0:T(1,128)}', space=vmem, size = 0x12000, scoped, tag = 'internal scratch']
  #allocation2 [shape = 'f32[16,128]{1,0:T(8,128)}', space=vmem, size = 0x2000, scoped, tag = 'scratch operand']
  %s0 = inlined_call_operand.hbm [shape: f32[16,128], index: 0, kind: input, shape index: {}]
  %s1 = inlined_call_operand.hbm [shape: f32[16,128], index: 1, kind: input, shape index: {}]
  %s2 = inlined_call_operand.hbm [shape: f32[128,128], index: 2, kind: input, shape index: {}]
  %s3 = inlined_call_operand.hbm [shape: f32[16,128], index: 3, kind: output, shape index: {}]
  %s4 = sld [smem:[#allocation0]]
  $region42: #{tpu_custom_call.1} parent=0
    _
  %s6 = ssub.s32 1, %s4
  %s7 = scalar_select 0, %s6, %s4
  $region1: #{tpu_custom_call.1} parent=0
    #allocation3 [shape = 'u8[8192]{0}', space=vmem, size = 0x2000, scoped, tag = 'input window, operand 0, single buffered']
    #allocation4 [shape = 's32[1]{0}', space=sflag, size = 0x4, scoped, tag = 'scoped memory for tpu_custom_call.1']
    #allocation5 [shape = 's32[1]{0}', space=sflag, size = 0x4, scoped, tag = 'scoped memory for tpu_custom_call.1']
    #allocation6 [shape = 'u8[8192]{0}', space=vmem, size = 0x2000, scoped, tag = 'input window, operand 1, single buffered']
    #allocation7 [shape = 's32[1]{0}', space=sflag, size = 0x4, scoped, tag = 'scoped memory for tpu_custom_call.1']
    #allocation8 [shape = 'u8[65536]{0}', space=vmem, size = 0x10000, scoped, tag = 'input window, operand 2, single buffered']
    #allocation9 [shape = 'u8[8192]{0}', space=vmem, size = 0x2000, scoped, tag = 'output window, operand 0, single buffered']
    %8 = vsyncpa [#allocation4], 0
    %9 = vsyncpa [#allocation7], 0
    %10 = vsyncpa [#allocation5], 0
    // Predicated region
    $region2: #{tpu_custom_call.1} parent=1 // pred_check
      _
    $region3: #{tpu_custom_call.1} parent=1 // pred_check_branch
      %12 = sbr.rel (0) target = $region5
    $region4: #{tpu_custom_call.1} parent=1 // pred_region
      %s14 = ssub.s32 256, 256
      %15 = vsyncadd [#allocation4], %s14
      %s16 = sshll.u32 [#allocation3], 4
      %s17 = int_to_ptr.vmem [resolvable:$true] %s16
      %22 = dma.hbm_to_vmem [thread:$0]  %s0, 256, %s17, [#allocation4], 128, 128, 8
    $region5: #{tpu_custom_call.1} parent=1 // pred_fallthru
      _
    // Predicated region
    $region6: #{tpu_custom_call.1} parent=1 // pred_check
      _
    $region7: #{tpu_custom_call.1} parent=1 // pred_check_branch
      %24 = sbr.rel (0) target = $region9
    $region8: #{tpu_custom_call.1} parent=1 // pred_region
      %s26 = ssub.s32 256, 256
      %27 = vsyncadd [#allocation7], %s26
      %s28 = sshll.u32 [#allocation6], 4
      %s29 = int_to_ptr.vmem [resolvable:$true] %s28
      %34 = dma.hbm_to_vmem [thread:$0]  %s1, 256, %s29, [#allocation7], 128, 128, 8
    $region9: #{tpu_custom_call.1} parent=1 // pred_fallthru
      _
    // Predicated region
    $region10: #{tpu_custom_call.1} parent=1 // pred_check
      _
    $region11: #{tpu_custom_call.1} parent=1 // pred_check_branch
      %36 = sbr.rel (0) target = $region13
    $region12: #{tpu_custom_call.1} parent=1 // pred_region
      %s38 = ssub.s32 2048, 2048
      %39 = vsyncadd [#allocation7], %s38
      %s40 = sshll.u32 [#allocation8], 4
      %s41 = int_to_ptr.vmem [resolvable:$true] %s40
      %46 = dma.hbm_to_vmem [thread:$0]  %s2, 2048, %s41, [#allocation7], 128, 128, 8
    $region13: #{tpu_custom_call.1} parent=1 // pred_fallthru
      _
    // Predicated region
    $region14: #{tpu_custom_call.1} parent=1 // pred_check
      _
    $region15: #{tpu_custom_call.1} parent=1 // pred_check_branch
      %48 = sbr.rel (0) target = $region17
    $region16: #{tpu_custom_call.1} parent=1 // pred_region
      %49 = dma.done [#allocation4], 256
    $region17: #{tpu_custom_call.1} parent=1 // pred_fallthru
      _
    // Predicated region
    $region18: #{tpu_custom_call.1} parent=1 // pred_check
      _
    $region19: #{tpu_custom_call.1} parent=1 // pred_check_branch
      %51 = sbr.rel (0) target = $region21
    $region20: #{tpu_custom_call.1} parent=1 // pred_region
      %52 = dma.done [#allocation7], 256
    $region21: #{tpu_custom_call.1} parent=1 // pred_fallthru
      _
    // Predicated region
    $region22: #{tpu_custom_call.1} parent=1 // pred_check
      _
    $region23: #{tpu_custom_call.1} parent=1 // pred_check_branch
      %54 = sbr.rel (0) target = $region25
    $region24: #{tpu_custom_call.1} parent=1 // pred_region
      %55 = dma.done [#allocation7], 2048
    $region25: #{tpu_custom_call.1} parent=1 // pred_fallthru
      _
    %p56 = scmp.eq.s32.totalorder 0, 0
    // Predicated region
    $region26: #{tpu_custom_call.1} parent=1 // pred_check
      %p57 = pneg %p56
    $region27: #{tpu_custom_call.1} parent=1 // pred_check_branch
      %59 = sbr.rel (%p57) target = $region29
    $region28: #{tpu_custom_call.1} parent=1 // pred_region
      %60 = vst [vmem:[#allocation2] sm:$0xff] 0.0
      %61 = vst [vmem:[#allocation2 + $0x8] sm:$0xff] 0.0
    $region29: #{tpu_custom_call.1} parent=1 // pred_fallthru
      _
    %v62 = vld [vmem:[#allocation3] sm:$0xff]
    %v63 = vld [vmem:[#allocation3 + $0x8] sm:$0xff]
    %v64 = vld [vmem:[#allocation6] sm:$0xff]
    %v65 = vld [vmem:[#allocation6 + $0x8] sm:$0xff]
    %v66 = vsub.f32 %v62, %v64
    %v67 = vsub.f32 %v63, %v65
    %v68 = vld [vmem:[#allocation2] sm:$0xff]
    %v69 = vld [vmem:[#allocation2 + $0x8] sm:$0xff]
    %v70 = vld [vmem:[#allocation8] sm:$0xff]
    %v71 = vld [vmem:[#allocation8 + $0x8] sm:$0xff]
    %v72 = vld [vmem:[#allocation8 + $0x10] sm:$0xff]
    %v73 = vld [vmem:[#allocation8 + $0x18] sm:$0xff]
    %v74 = vld [vmem:[#allocation8 + $0x20] sm:$0xff]
    %v75 = vld [vmem:[#allocation8 + $0x28] sm:$0xff]
    %v76 = vld [vmem:[#allocation8 + $0x30] sm:$0xff]
    %v77 = vld [vmem:[#allocation8 + $0x38] sm:$0xff]
    %v78 = vld [vmem:[#allocation8 + $0x40] sm:$0xff]
    %v79 = vld [vmem:[#allocation8 + $0x48] sm:$0xff]
    %v80 = vld [vmem:[#allocation8 + $0x50] sm:$0xff]
    %v81 = vld [vmem:[#allocation8 + $0x58] sm:$0xff]
    %v82 = vld [vmem:[#allocation8 + $0x60] sm:$0xff]
    %v83 = vld [vmem:[#allocation8 + $0x68] sm:$0xff]
    %v84 = vld [vmem:[#allocation8 + $0x70] sm:$0xff]
    %v85 = vld [vmem:[#allocation8 + $0x78] sm:$0xff]
    %86 = vmatprep.subr.mxu0 0.0
    %87 = vmatpush1.xpose.msra.mxu0 %v70
    %88 = vmatprep.subr.mxu0 0.0
    %89 = vmatpush1.xpose.msra.mxu0 %v71
    %90 = vmatprep.subr.mxu0 0.0
    %91 = vmatpush1.xpose.msra.mxu0 %v72
    %92 = vmatprep.subr.mxu0 0.0
    %93 = vmatpush1.xpose.msra.mxu0 %v73
    %94 = vmatprep.subr.mxu0 0.0
    %95 = vmatpush1.xpose.msra.mxu0 %v74
    %96 = vmatprep.subr.mxu0 0.0
    %97 = vmatpush1.xpose.msra.mxu0 %v75
    %98 = vmatprep.subr.mxu0 0.0
    %99 = vmatpush1.xpose.msra.mxu0 %v76
    %100 = vmatprep.subr.mxu0 0.0
    %101 = vmatpush1.xpose.msra.mxu0 %v77
    %102 = vmatprep.subr.mxu0 0.0
    %103 = vmatpush1.xpose.msra.mxu0 %v78
    %104 = vmatprep.subr.mxu0 0.0
    %105 = vmatpush1.xpose.msra.mxu0 %v79
    %106 = vmatprep.subr.mxu0 0.0
    %107 = vmatpush1.xpose.msra.mxu0 %v80
    %108 = vmatprep.subr.mxu0 0.0
    %109 = vmatpush1.xpose.msra.mxu0 %v81
    %110 = vmatprep.subr.mxu0 0.0
    %111 = vmatpush1.xpose.msra.mxu0 %v82
    %112 = vmatprep.subr.mxu0 0.0
    %113 = vmatpush1.xpose.msra.mxu0 %v83
    %114 = vmatprep.subr.mxu0 0.0
    %115 = vmatpush1.xpose.msra.mxu0 %v84
    %116 = vmatprep.subr.mxu0 0.0
    %117 = vmatpush1.xpose.msra.mxu0 %v85
    %118 = vmatprep.subr.mxu0 0.0
    %119 = vmatpush1.xpose.msra.mxu0 0.0
    %120 = vmatprep.subr.mxu0 0.0
    %121 = vmatpush1.xpose.msra.mxu0 0.0
    %122 = vmatprep.subr.mxu0 0.0
    %123 = vmatpush1.xpose.msra.mxu0 0.0
    %124 = vmatprep.subr.mxu0 0.0
    %125 = vmatpush1.xpose.msra.mxu0 0.0
    %126 = vmatprep.subr.mxu0 0.0
    %127 = vmatpush1.xpose.msra.mxu0 0.0
    %128 = vmatprep.subr.mxu0 0.0
    %129 = vmatpush1.xpose.msra.mxu0 0.0
    %130 = vmatprep.subr.mxu0 0.0
    %131 = vmatpush1.xpose.msra.mxu0 0.0
    %132 = vmatprep.subr.mxu0 0.0
    %133 = vmatpush1.xpose.msra.mxu0 0.0
    %134 = vmatprep.subr.mxu0 0.0
    %135 = vmatpush1.xpose.msra.mxu0 0.0
    %136 = vmatprep.subr.mxu0 0.0
    %137 = vmatpush1.xpose.msra.mxu0 0.0
    %138 = vmatprep.subr.mxu0 0.0
    %139 = vmatpush1.xpose.msra.mxu0 0.0
    %140 = vmatprep.subr.mxu0 0.0
    %141 = vmatpush1.xpose.msra.mxu0 0.0
    %142 = vmatprep.subr.mxu0 0.0
    %143 = vmatpush1.xpose.msra.mxu0 0.0
    %144 = vmatprep.subr.mxu0 0.0
    %145 = vmatpush1.xpose.msra.mxu0 0.0
    %146 = vmatprep.subr.mxu0 0.0
    %147 = vmatpush1.xpose.msra.mxu0 0.0
    %148 = vmatprep.subr.mxu0 0.0
    %149 = vmatpush1.xpose.msra.mxu0 0.0
    %150 = vmatprep.mubr.f32.mxu0 0.0
    %151 = vmatmul.mubr.f32.gmra.mrb[0].mxu0 %v66
    %v152 = vpop.f32.mrb[0].mxu0
    %v153 = vadd.f32 0.0, %v152
    %v154 = vpop.f32.mrb[0].mxu0
    %155 = vmatprep.mubr.f32.mxu0 0.0
    %156 = vmatmul.mubr.f32.gmra.mrb[0].mxu0 %v67
    %v157 = vpop.f32.mrb[0].mxu0
    %v158 = vadd.f32 0.0, %v157
    %v159 = vpop.f32.mrb[0].mxu0
    %160 = vdwg.mxu0
    %v161 = vadd.f32 %v68, %v153
    %v162 = vadd.f32 %v69, %v158
    %163 = vst [vmem:[#allocation2] sm:$0xff] %v161
    %164 = vst [vmem:[#allocation2 + $0x8] sm:$0xff] %v162
    // Predicated region
    $region30: #{tpu_custom_call.1} parent=1 // pred_check
      %p165 = pneg %p56
    $region31: #{tpu_custom_call.1} parent=1 // pred_check_branch
      %167 = sbr.rel (%p165) target = $region33
    $region32: #{tpu_custom_call.1} parent=1 // pred_region
      %v168 = vld [vmem:[#allocation2] sm:$0xff]
      %v169 = vld [vmem:[#allocation2 + $0x8] sm:$0xff]
      %170 = vst [vmem:[#allocation9] sm:$0xff] %v168
      %171 = vst [vmem:[#allocation9 + $0x8] sm:$0xff] %v169
    $region33: #{tpu_custom_call.1} parent=1 // pred_fallthru
      _
    // Predicated region
    $region34: #{tpu_custom_call.1} parent=1 // pred_check
      _
    $region35: #{tpu_custom_call.1} parent=1 // pred_check_branch
      %173 = sbr.rel (0) target = $region37
    $region36: #{tpu_custom_call.1} parent=1 // pred_region
      %s175 = ssub.s32 256, 256
      %176 = vsyncadd [#allocation5], %s175
      %s177 = sshll.u32 [#allocation9], 4
      %s178 = int_to_ptr.vmem [resolvable:$true] %s177
      %183 = dma.vmem_to_hbm [thread:$0]  %s178, 256, %s3, [#allocation5], 128, 128, 8
    $region37: #{tpu_custom_call.1} parent=1 // pred_fallthru
      _
    // Predicated region
    $region38: #{tpu_custom_call.1} parent=1 // pred_check
      _
    $region39: #{tpu_custom_call.1} parent=1 // pred_check_branch
      %185 = sbr.rel (0) target = $region41
    $region40: #{tpu_custom_call.1} parent=1 // pred_region
      %186 = dma.done [#allocation5], 256
    $region41: #{tpu_custom_call.1} parent=1 // pred_fallthru
      _
    %187 = vsyncpa [#allocation4], 1
    %188 = vsyncpa [#allocation7], 1
    %189 = vsyncpa [#allocation5], 1

</llo_original>
